<compile_context>
chip_gen: v7x
topology: tpu7x:2x2x1
jax: 0.10.0
libtpu: 0.0.40
codegen_flags: <defaults>
</compile_context>

<pallas_src>
import functools

import jax
import jax.numpy as jnp
from jax.experimental import pallas as pl
from jax.experimental.pallas import tpu as pltpu

IN_FEATURES = 20
HIDDEN = 20
OUT_FEATURES = 2
LANE = 128


def _round_up(n, m):
    return ((n + m - 1) // m) * m


def domain_pred_kernel(x_ref, w1_ref, b1_ref, w2_ref, b2_ref, out_ref):
    # x: (20, TILE_B) bf16   w1: (20, 20) bf16   b1: (20, 1) f32
    # w2: (2, 20) f32        b2: (2, 1) f32      out: (2, TILE_B) f32
    x = x_ref[...]

    # fc1 + ReLU: bf16 MXU matmul, f32 accumulate, lane-dense N = TILE_B.
    h = jnp.dot(w1_ref[...], x, preferred_element_type=jnp.float32) + b1_ref[...]
    h = jnp.maximum(h, 0.0)

    # fc_final: (2, 20) @ (20, TILE_B) -> (2, TILE_B), f32.
    logits = jnp.dot(w2_ref[...], h, preferred_element_type=jnp.float32) + b2_ref[...]

    # Closed-form 2-class log_softmax (elementwise, no reductions):
    #   d = z0 - z1 ; log_p0 = -softplus(-d) ; log_p1 = -softplus(d)
    # with the numerically stable softplus(t) = max(t, 0) + log1p(exp(-|t|)).
    d = logits[0:1, :] - logits[1:2, :]              # (1, TILE_B)
    common = jnp.log1p(jnp.exp(-jnp.abs(d)))         # shared EUP term
    log_p0 = -(jnp.maximum(-d, 0.0) + common)
    log_p1 = -(jnp.maximum(d, 0.0) + common)
    out_ref[...] = jnp.concatenate([log_p0, log_p1], axis=0)


@functools.partial(jax.jit, static_argnames=("tile_b",))
def domain_pred(x, w1, b1, w2, b2, *, tile_b=512):
    """x: (B, 20) f32. Weights in torch layout: w1 (20,20), b1 (20,), w2 (2,20), b2 (2,).

    Returns (B, 2) f32 log-probabilities.
    """
    B = x.shape[0]
    tile_b = min(tile_b, _round_up(B, LANE))
    Bp = _round_up(B, tile_b)

    # Layout plumbing in the wrapper: batch-on-lanes + bf16 for the bandwidth-heavy array.
    xt = jnp.transpose(x).astype(jnp.bfloat16)           # (20, B)
    if Bp != B:
        xt = jnp.pad(xt, ((0, 0), (0, Bp - B)))          # pad batch (lanes); sliced off below
    w1b = w1.astype(jnp.bfloat16)                        # (20, 20)
    b1c = b1.reshape(HIDDEN, 1).astype(jnp.float32)      # (20, 1)
    w2c = w2.astype(jnp.float32)                         # (2, 20)
    b2c = b2.reshape(OUT_FEATURES, 1).astype(jnp.float32)  # (2, 1)

    grid = (Bp // tile_b,)
    flops = 2 * Bp * (IN_FEATURES * HIDDEN + HIDDEN * OUT_FEATURES)
    bytes_accessed = (xt.size * 2                     # bf16 x
                      + Bp * OUT_FEATURES * 4         # f32 out
                      + w1b.size * 2
                      + (b1c.size + w2c.size + b2c.size) * 4)

    out = pl.pallas_call(
        domain_pred_kernel,
        out_shape=jax.ShapeDtypeStruct((OUT_FEATURES, Bp), jnp.float32),
        grid=grid,
        in_specs=[
            pl.BlockSpec((IN_FEATURES, tile_b), lambda i: (0, i)),       # x tile (batch on lanes)
            pl.BlockSpec((HIDDEN, IN_FEATURES), lambda i: (0, 0)),       # w1 (grid-invariant)
            pl.BlockSpec((HIDDEN, 1), lambda i: (0, 0)),                 # b1
            pl.BlockSpec((OUT_FEATURES, HIDDEN), lambda i: (0, 0)),      # w2
            pl.BlockSpec((OUT_FEATURES, 1), lambda i: (0, 0)),           # b2
        ],
        out_specs=pl.BlockSpec((OUT_FEATURES, tile_b), lambda i: (0, i)),
        compiler_params=pltpu.CompilerParams(
            dimension_semantics=("parallel",)),                          # megacore sharding on v7x
        cost_estimate=pl.CostEstimate(
            flops=flops, transcendentals=2 * Bp, bytes_accessed=bytes_accessed),
    )(xt, w1b, b1c, w2c, b2c)

    return jnp.transpose(out[:, :B])                                     # (B, 2)


def init_params(key):
    # Deterministic synthetic init mimicking nn.Linear's uniform(-1/sqrt(fan_in), 1/sqrt(fan_in)).
    # Weights kept in torch layout (out_features, in_features).
    k1, k2, k3, k4 = jax.random.split(key, 4)
    bound1 = 1.0 / (IN_FEATURES ** 0.5)
    bound2 = 1.0 / (HIDDEN ** 0.5)
    w1 = jax.random.uniform(k1, (HIDDEN, IN_FEATURES), jnp.float32, -bound1, bound1)
    b1 = jax.random.uniform(k2, (HIDDEN,), jnp.float32, -bound1, bound1)
    w2 = jax.random.uniform(k3, (OUT_FEATURES, HIDDEN), jnp.float32, -bound2, bound2)
    b2 = jax.random.uniform(k4, (OUT_FEATURES,), jnp.float32, -bound2, bound2)
    return w1, b1, w2, b2


def reference(x, w1, b1, w2, b2):
    # Mirror the kernel's bf16 input path for x/w1, f32 math elsewhere.
    xb = x.astype(jnp.bfloat16).astype(jnp.float32)
    w1b = w1.astype(jnp.bfloat16).astype(jnp.float32)
    h = jnp.maximum(xb @ w1b.T + b1, 0.0)
    logits = h @ w2.T + b2
    return jax.nn.log_softmax(logits, axis=-1)


if __name__ == "__main__":
    key = jax.random.PRNGKey(0)
    kx, kd, kp = jax.random.split(key, 3)

    B = 8
    x = jax.random.normal(kx, (B, IN_FEATURES), jnp.float32)
    domain = jax.random.normal(kd, (B, 1), jnp.float32)  # part of the module input tuple; unused in forward

    w1, b1, w2, b2 = init_params(kp)

    out = domain_pred(x, w1, b1, w2, b2)
    out = jax.block_until_ready(out)

    ref = reference(x, w1, b1, w2, b2)
    assert out.shape == (B, OUT_FEATURES)
    assert bool(jnp.allclose(out, ref, atol=1e-4, rtol=1e-4)), "mismatch vs reference"

    print("KERNEL_OK")
</pallas_src>

<mosaic_0001>
module attributes {stable_mosaic.version = 11 : i64} {
  func.func @domain_pred_kernel(%arg0: i32, %arg1: memref<20x128xbf16, #tpu.memory_space<vmem>>, %arg2: memref<20x20xbf16, #tpu.memory_space<vmem>>, %arg3: memref<20x1xf32, #tpu.memory_space<vmem>>, %arg4: memref<2x20xf32, #tpu.memory_space<vmem>>, %arg5: memref<2x1xf32, #tpu.memory_space<vmem>>, %arg6: memref<2x128xf32, #tpu.memory_space<vmem>>) attributes {dimension_semantics = [#tpu.dimension_semantics<parallel>], iteration_bounds = array<i64: 1>, scalar_prefetch = 0 : i64, scratch_operands = 0 : i64, tpu.core_type = #tpu.core_type<tc>, window_params = [{transform_indices = @transform_0, window_bounds = array<i64: 20, 128>}, {pipeline_mode = #tpu.pipeline_mode<synchronous>, transform_indices = @transform_1, window_bounds = array<i64: 20, 20>}, {pipeline_mode = #tpu.pipeline_mode<synchronous>, transform_indices = @transform_2, window_bounds = array<i64: 20, 1>}, {pipeline_mode = #tpu.pipeline_mode<synchronous>, transform_indices = @transform_3, window_bounds = array<i64: 2, 20>}, {pipeline_mode = #tpu.pipeline_mode<synchronous>, transform_indices = @transform_4, window_bounds = array<i64: 2, 1>}, {transform_indices = @transform_5, window_bounds = array<i64: 2, 128>}]} {
    %c0 = arith.constant 0 : index
    %c0_0 = arith.constant 0 : index
    %0 = vector.load %arg1[%c0, %c0_0] : memref<20x128xbf16, #tpu.memory_space<vmem>>, vector<20x128xbf16>
    %c0_1 = arith.constant 0 : index
    %c0_2 = arith.constant 0 : index
    %1 = vector.load %arg2[%c0_1, %c0_2] : memref<20x20xbf16, #tpu.memory_space<vmem>>, vector<20x20xbf16>
    %cst = arith.constant dense<0.000000e+00> : vector<20x128xf32>
    %2 = tpu.matmul %1, %0, %cst {dimension_numbers = #tpu.dot_dimension_numbers<[1], [0], [0], [1], [0, 0, 1, 1], [], []>} : vector<20x20xbf16>, vector<20x128xbf16>, vector<20x128xf32> -> vector<20x128xf32>
    %c0_3 = arith.constant 0 : index
    %c0_4 = arith.constant 0 : index
    %3 = vector.load %arg3[%c0_3, %c0_4] : memref<20x1xf32, #tpu.memory_space<vmem>>, vector<20x1xf32>
    %4 = vector.broadcast %3 : vector<20x1xf32> to vector<20x128xf32>
    %5 = arith.addf %2, %4 : vector<20x128xf32>
    %cst_5 = arith.constant 0.000000e+00 : f32
    %6 = vector.broadcast %cst_5 : f32 to vector<20x128xf32>
    %7 = arith.maximumf %5, %6 : vector<20x128xf32>
    %c0_6 = arith.constant 0 : index
    %c0_7 = arith.constant 0 : index
    %8 = vector.load %arg4[%c0_6, %c0_7] : memref<2x20xf32, #tpu.memory_space<vmem>>, vector<2x20xf32>
    %cst_8 = arith.constant dense<0.000000e+00> : vector<2x128xf32>
    %9 = tpu.matmul %8, %7, %cst_8 {dimension_numbers = #tpu.dot_dimension_numbers<[1], [0], [0], [1], [0, 0, 1, 1], [], []>} : vector<2x20xf32>, vector<20x128xf32>, vector<2x128xf32> -> vector<2x128xf32>
    %c0_9 = arith.constant 0 : index
    %c0_10 = arith.constant 0 : index
    %10 = vector.load %arg5[%c0_9, %c0_10] : memref<2x1xf32, #tpu.memory_space<vmem>>, vector<2x1xf32>
    %11 = vector.broadcast %10 : vector<2x1xf32> to vector<2x128xf32>
    %12 = arith.addf %9, %11 : vector<2x128xf32>
    %13 = vector.extract_strided_slice %12 {offsets = [0, 0], sizes = [1, 128], strides = [1, 1]} : vector<2x128xf32> to vector<1x128xf32>
    %14 = vector.extract_strided_slice %12 {offsets = [1, 0], sizes = [1, 128], strides = [1, 1]} : vector<2x128xf32> to vector<1x128xf32>
    %15 = arith.subf %13, %14 : vector<1x128xf32>
    %16 = math.absf %15 : vector<1x128xf32>
    %cst_11 = arith.constant 0.000000e+00 : f32
    %17 = vector.broadcast %cst_11 : f32 to vector<1x128xf32>
    %18 = arith.subf %17, %16 : vector<1x128xf32>
    %19 = math.exp %18 : vector<1x128xf32>
    %20 = math.log1p %19 : vector<1x128xf32>
    %cst_12 = arith.constant 0.000000e+00 : f32
    %21 = vector.broadcast %cst_12 : f32 to vector<1x128xf32>
    %22 = arith.subf %21, %15 : vector<1x128xf32>
    %cst_13 = arith.constant 0.000000e+00 : f32
    %23 = vector.broadcast %cst_13 : f32 to vector<1x128xf32>
    %24 = arith.maximumf %22, %23 : vector<1x128xf32>
    %25 = arith.addf %24, %20 : vector<1x128xf32>
    %cst_14 = arith.constant 0.000000e+00 : f32
    %26 = vector.broadcast %cst_14 : f32 to vector<1x128xf32>
    %27 = arith.subf %26, %25 : vector<1x128xf32>
    %cst_15 = arith.constant 0.000000e+00 : f32
    %28 = vector.broadcast %cst_15 : f32 to vector<1x128xf32>
    %29 = arith.maximumf %15, %28 : vector<1x128xf32>
    %30 = arith.addf %29, %20 : vector<1x128xf32>
    %cst_16 = arith.constant 0.000000e+00 : f32
    %31 = vector.broadcast %cst_16 : f32 to vector<1x128xf32>
    %32 = arith.subf %31, %30 : vector<1x128xf32>
    %33 = tpu.concatenate %27, %32 in 0 : vector<1x128xf32>, vector<1x128xf32> -> vector<2x128xf32>
    %c0_17 = arith.constant 0 : index
    %c0_18 = arith.constant 0 : index
    %34 = vector.load %arg6[%c0_17, %c0_18] : memref<2x128xf32, #tpu.memory_space<vmem>>, vector<2x128xf32>
    tpu.vector_store %arg6[%c0_17, %c0_18], %33 {strides = array<i32>} : memref<2x128xf32, #tpu.memory_space<vmem>>, vector<2x128xf32>,
    return
  }
  func.func @transform_0(%arg0: i32) -> (i32, i32) {
    %c0_i32 = arith.constant 0 : i32
    %c0_i32_0 = arith.constant 0 : i32
    return %c0_i32, %arg0 : i32, i32
  }
  func.func @transform_1(%arg0: i32) -> (i32, i32) {
    %c0_i32 = arith.constant 0 : i32
    %c0_i32_0 = arith.constant 0 : i32
    %c0_i32_1 = arith.constant 0 : i32
    return %c0_i32, %c0_i32_0 : i32, i32
  }
  func.func @transform_2(%arg0: i32) -> (i32, i32) {
    %c0_i32 = arith.constant 0 : i32
    %c0_i32_0 = arith.constant 0 : i32
    %c0_i32_1 = arith.constant 0 : i32
    return %c0_i32, %c0_i32_0 : i32, i32
  }
  func.func @transform_3(%arg0: i32) -> (i32, i32) {
    %c0_i32 = arith.constant 0 : i32
    %c0_i32_0 = arith.constant 0 : i32
    %c0_i32_1 = arith.constant 0 : i32
    return %c0_i32, %c0_i32_0 : i32, i32
  }
  func.func @transform_4(%arg0: i32) -> (i32, i32) {
    %c0_i32 = arith.constant 0 : i32
    %c0_i32_0 = arith.constant 0 : i32
    %c0_i32_1 = arith.constant 0 : i32
    return %c0_i32, %c0_i32_0 : i32, i32
  }
  func.func @transform_5(%arg0: i32) -> (i32, i32) {
    %c0_i32 = arith.constant 0 : i32
    %c0_i32_0 = arith.constant 0 : i32
    return %c0_i32, %arg0 : i32, i32
  }
}

</mosaic_0001>

<llo_original>
// kernel: domain_pred.1
$region0: #{domain_pred.1}
  #allocation0 [shape = 'u32[]', space=smem, size = 0x4, offset = 0x4, fixed_abs, tag = 'smem constant byte address 0x4 - core index']
  #allocation1 [shape = 'u32[144,128]{1,0:T(1,128)}', space=vmem, size = 0x12000, scoped, tag = 'internal scratch']
  %s0 = inlined_call_operand.vmem [shape: bf16[20,128], index: 0, kind: input, shape index: {}]
  %s1 = inlined_call_operand.vmem [shape: bf16[20,20], index: 1, kind: input, shape index: {}]
  %s2 = inlined_call_operand.vmem [shape: f32[20,1], index: 2, kind: input, shape index: {}]
  %s3 = inlined_call_operand.vmem [shape: f32[2,20], index: 3, kind: input, shape index: {}]
  %s4 = inlined_call_operand.vmem [shape: f32[2,1], index: 4, kind: input, shape index: {}]
  %s5 = inlined_call_operand.vmem [shape: f32[2,128], index: 5, kind: output, shape index: {}]
  %s6 = sld [smem:[#allocation0]]
  $region30: #{domain_pred.1} parent=0
    _
  %s8 = ssub.s32 1, %s6
  %s9 = scalar_select 0, %s8, %s6
  // Predicated region
  $region2: #{domain_pred.1} parent=0 // pred_check
    _
  $region3: #{domain_pred.1} parent=0 // pred_check_branch
    %11 = sbr.rel (0) target = $region5
  $region4: #{domain_pred.1} parent=0 // pred_region
    _
  $region5: #{domain_pred.1} parent=0 // pred_fallthru
    _
  // Predicated region
  $region6: #{domain_pred.1} parent=0 // pred_check
    _
  $region7: #{domain_pred.1} parent=0 // pred_check_branch
    %13 = sbr.rel (0) target = $region9
  $region8: #{domain_pred.1} parent=0 // pred_region
    _
  $region9: #{domain_pred.1} parent=0 // pred_fallthru
    _
  // Predicated region
  $region10: #{domain_pred.1} parent=0 // pred_check
    _
  $region11: #{domain_pred.1} parent=0 // pred_check_branch
    %15 = sbr.rel (0) target = $region13
  $region12: #{domain_pred.1} parent=0 // pred_region
    _
  $region13: #{domain_pred.1} parent=0 // pred_fallthru
    _
  // Predicated region
  $region14: #{domain_pred.1} parent=0 // pred_check
    _
  $region15: #{domain_pred.1} parent=0 // pred_check_branch
    %17 = sbr.rel (0) target = $region17
  $region16: #{domain_pred.1} parent=0 // pred_region
    _
  $region17: #{domain_pred.1} parent=0 // pred_fallthru
    _
  // Predicated region
  $region18: #{domain_pred.1} parent=0 // pred_check
    _
  $region19: #{domain_pred.1} parent=0 // pred_check_branch
    %19 = sbr.rel (0) target = $region21
  $region20: #{domain_pred.1} parent=0 // pred_region
    _
  $region21: #{domain_pred.1} parent=0 // pred_fallthru
    _
  %v21 = vld [vmem:[%s0] sm:$0xf]
  %v22 = vld [vmem:[%s0 + $0x4] sm:$0xf]
  %v23 = vld [vmem:[%s0 + $0x8] sm:$0x3]
  %v24 = vld [vmem:[%s1] sm:$0xf]
  %v25 = vld [vmem:[%s1 + $0x4] sm:$0xf]
  %v26 = vld [vmem:[%s1 + $0x8] sm:$0x3]
  %v27 = vld [vmem:[%s2] sm:$0xff]
  %v28 = vld [vmem:[%s2 + $0x8] sm:$0xff]
  %v29 = vld [vmem:[%s2 + $0x10] sm:$0xf]
  %31 = vset.pattern.permute.xlu0 0
  %32 = vperm.xlu0 %31, %v27
  %v33 = vpop.permute.xlu0 %32
  %36 = vset.pattern.permute.xlu0 0
  %37 = vperm.xlu0 %36, %v28
  %v38 = vpop.permute.xlu0 %37
  %41 = vset.pattern.permute.xlu0 0
  %42 = vperm.xlu0 %41, %v29
  %v43 = vpop.permute.xlu0 %42
  %v48 = vunpack.c.l.b16 %v24
  %v49 = vunpack.c.l.b16 %v25
  %v50 = vunpack.c.l.b16 %v26
  %v51 = vpack.c.b16 %v49, %v48
  %v52 = vpack.c.b16 %v50, %v50
  %v56 = vunpack.c.l.b16 %v21
  %v57 = vunpack.c.l.b16 %v22
  %v58 = vunpack.c.l.b16 %v23
  %v59 = vpack.c.b16 %v57, %v56
  %v60 = vpack.c.b16 %v58, %v58
  %vm62 = vcmask 162816
  %v64 = vsel %vm62, %v51, 0
  %v67 = vsel %vm62, %v52, 0
  %vm69 = vcmask 1041408
  %v71 = vsel %vm69, %v60, 0
  %73 = vmatprep.subr.bf16.mxu0 0
  %74 = vmatpush1.bf16.msra.mxu0 %v59
  %75 = vmatprep.subr.bf16.mxu0 0
  %76 = vmatpush1.bf16.msra.mxu0 %v71
  %77 = vmatprep.subr.bf16.mxu0 0
  %78 = vmatpush1.bf16.msra.mxu0 0
  %79 = vmatprep.subr.bf16.mxu0 0
  %80 = vmatpush1.bf16.msra.mxu0 0
  %81 = vmatprep.subr.bf16.mxu0 0
  %82 = vmatpush1.bf16.msra.mxu0 0
  %83 = vmatprep.subr.bf16.mxu0 0
  %84 = vmatpush1.bf16.msra.mxu0 0
  %85 = vmatprep.subr.bf16.mxu0 0
  %86 = vmatpush1.bf16.msra.mxu0 0
  %87 = vmatprep.subr.bf16.mxu0 0
  %88 = vmatpush1.bf16.msra.mxu0 0
  %89 = vmatprep.subr.bf16.mxu0 0
  %90 = vmatpush1.bf16.msra.mxu0 0
  %91 = vmatprep.subr.bf16.mxu0 0
  %92 = vmatpush1.bf16.msra.mxu0 0
  %93 = vmatprep.subr.bf16.mxu0 0
  %94 = vmatpush1.bf16.msra.mxu0 0
  %95 = vmatprep.subr.bf16.mxu0 0
  %96 = vmatpush1.bf16.msra.mxu0 0
  %97 = vmatprep.subr.bf16.mxu0 0
  %98 = vmatpush1.bf16.msra.mxu0 0
  %99 = vmatprep.subr.bf16.mxu0 0
  %100 = vmatpush1.bf16.msra.mxu0 0
  %101 = vmatprep.subr.bf16.mxu0 0
  %102 = vmatpush1.bf16.msra.mxu0 0
  %103 = vmatprep.subr.bf16.mxu0 0
  %104 = vmatpush1.bf16.msra.mxu0 0
  %105 = vmatprep.mubr.bf16.mxu0 0
  %106 = vmatmul.mubr.bf16.gmra.mrb[0].mxu0 %v64
  %v107 = vpop.f32.mrb[0].mxu0
  %v108 = vadd.f32 %v33, %v107
  %v109 = vpop.f32.mrb[0].mxu0
  %v110 = vpop.f32.mrb[0].mxu0
  %v111 = vadd.f32 %v38, %v110
  %v112 = vpop.f32.mrb[0].mxu0
  %113 = vmatprep.mubr.bf16.mxu0 0
  %114 = vmatmul.mubr.bf16.gmra.mrb[0].mxu0 %v67
  %v115 = vpop.f32.mrb[0].mxu0
  %v116 = vadd.f32 %v43, %v115
  %v117 = vpop.f32.mrb[0].mxu0
  %v118 = vpop.f32.mrb[0].mxu0
  %v119 = vpop.f32.mrb[0].mxu0
  %120 = vdwg.mxu0
  %v121 = vmax.f32 %v108, 0.0
  %v122 = vmax.f32 %v111, 0.0
  %v123 = vmax.f32 %v116, 0.0
  %v124 = vld [vmem:[%s3] sm:$0x3]
  %v125 = vld [vmem:[%s4] sm:$0x3]
  %127 = vset.pattern.permute.xlu0 0
  %128 = vperm.xlu0 %127, %v125
  %v129 = vpop.permute.xlu0 %128
  %v132 = vsel %vm62, %v124, 0
  %vm134 = vcmask 1043456
  %v136 = vsel %vm134, %v123, 0
  %138 = vmatprep.subr.mxu0 0.0
  %139 = vmatpush1.msra.mxu0 %v121
  %140 = vmatprep.subr.mxu0 0.0
  %141 = vmatpush1.msra.mxu0 %v122
  %142 = vmatprep.subr.mxu0 0.0
  %143 = vmatpush1.msra.mxu0 %v136
  %144 = vmatprep.subr.mxu0 0.0
  %145 = vmatpush1.msra.mxu0 0.0
  %146 = vmatprep.subr.mxu0 0.0
  %147 = vmatpush1.msra.mxu0 0.0
  %148 = vmatprep.subr.mxu0 0.0
  %149 = vmatpush1.msra.mxu0 0.0
  %150 = vmatprep.subr.mxu0 0.0
  %151 = vmatpush1.msra.mxu0 0.0
  %152 = vmatprep.subr.mxu0 0.0
  %153 = vmatpush1.msra.mxu0 0.0
  %154 = vmatprep.subr.mxu0 0.0
  %155 = vmatpush1.msra.mxu0 0.0
  %156 = vmatprep.subr.mxu0 0.0
  %157 = vmatpush1.msra.mxu0 0.0
  %158 = vmatprep.subr.mxu0 0.0
  %159 = vmatpush1.msra.mxu0 0.0
  %160 = vmatprep.subr.mxu0 0.0
  %161 = vmatpush1.msra.mxu0 0.0
  %162 = vmatprep.subr.mxu0 0.0
  %163 = vmatpush1.msra.mxu0 0.0
  %164 = vmatprep.subr.mxu0 0.0
  %165 = vmatpush1.msra.mxu0 0.0
  %166 = vmatprep.subr.mxu0 0.0
  %167 = vmatpush1.msra.mxu0 0.0
  %168 = vmatprep.subr.mxu0 0.0
  %169 = vmatpush1.msra.mxu0 0.0
  %170 = vmatprep.subr.mxu0 0.0
  %171 = vmatpush1.msra.mxu0 0.0
  %172 = vmatprep.subr.mxu0 0.0
  %173 = vmatpush1.msra.mxu0 0.0
  %174 = vmatprep.subr.mxu0 0.0
  %175 = vmatpush1.msra.mxu0 0.0
  %176 = vmatprep.subr.mxu0 0.0
  %177 = vmatpush1.msra.mxu0 0.0
  %178 = vmatprep.subr.mxu0 0.0
  %179 = vmatpush1.msra.mxu0 0.0
  %180 = vmatprep.subr.mxu0 0.0
  %181 = vmatpush1.msra.mxu0 0.0
  %182 = vmatprep.subr.mxu0 0.0
  %183 = vmatpush1.msra.mxu0 0.0
  %184 = vmatprep.subr.mxu0 0.0
  %185 = vmatpush1.msra.mxu0 0.0
  %186 = vmatprep.subr.mxu0 0.0
  %187 = vmatpush1.msra.mxu0 0.0
  %188 = vmatprep.subr.mxu0 0.0
  %189 = vmatpush1.msra.mxu0 0.0
  %190 = vmatprep.subr.mxu0 0.0
  %191 = vmatpush1.msra.mxu0 0.0
  %192 = vmatprep.subr.mxu0 0.0
  %193 = vmatpush1.msra.mxu0 0.0
  %194 = vmatprep.subr.mxu0 0.0
  %195 = vmatpush1.msra.mxu0 0.0
  %196 = vmatprep.subr.mxu0 0.0
  %197 = vmatpush1.msra.mxu0 0.0
  %198 = vmatprep.subr.mxu0 0.0
  %199 = vmatpush1.msra.mxu0 0.0
  %200 = vmatprep.subr.mxu0 0.0
  %201 = vmatpush1.msra.mxu0 0.0
  %202 = vmatprep.mubr.f32.mxu0 0.0
  %203 = vmatmul.mubr.f32.gmra.mrb[0].mxu0 %v132
  %v204 = vpop.f32.mrb[0].mxu0
  %v205 = vadd.f32 %v129, %v204
  %v206 = vpop.f32.mrb[0].mxu0
  %207 = vdwg.mxu0
  %v209 = vrot.slane %v205, 1
  %v211 = vsub.f32 %v205, %v209
  %v212 = vand.u32 2147483647, %v211
  %v213 = vsub.f32 0.0, %v212
  %v214 = vmul.f32 %v213, 1.442695
  %v215 = vpow.pop %v214
  %v216 = vadd.f32 %v215, 1.0
  %v217 = vlog2.pop %v216
  %v218 = vmul.f32 %v217, 0.6931472
  %v219 = vmul.f32 -0.5, %v215
  %v220 = vadd.f32 %v219, 1.0
  %v221 = vmul.f32 %v220, %v215
  %v222 = vand.u32 2147483647, %v215
  %vm223 = vcmp.lt.f32.partialorder %v222, 0.0004427343
  %v224 = vsel %vm223, %v221, %v218
  %v225 = vsub.f32 0.0, %v211
  %v226 = vmax.f32 %v225, 0.0
  %v227 = vadd.f32 %v226, %v224
  %v228 = vsub.f32 0.0, %v227
  %v229 = vmax.f32 %v211, 0.0
  %v230 = vadd.f32 %v229, %v224
  %v231 = vsub.f32 0.0, %v230
  %v233 = vrot.slane %v231, 7
  %vm235 = vcmask 1040384
  %v236 = vsel %vm235, %v228, %v233
  %237 = vst [vmem:[%s5] sm:$0x3] %v236
  // Predicated region
  $region22: #{domain_pred.1} parent=0 // pred_check
    _
  $region23: #{domain_pred.1} parent=0 // pred_check_branch
    %239 = sbr.rel (0) target = $region25
  $region24: #{domain_pred.1} parent=0 // pred_region
    _
  $region25: #{domain_pred.1} parent=0 // pred_fallthru
    _
  // Predicated region
  $region26: #{domain_pred.1} parent=0 // pred_check
    _
  $region27: #{domain_pred.1} parent=0 // pred_check_branch
    %241 = sbr.rel (0) target = $region29
  $region28: #{domain_pred.1} parent=0 // pred_region
    _
  $region29: #{domain_pred.1} parent=0 // pred_fallthru
    _

</llo_original>
